<compile_context>
chip_gen: v7x
topology: tpu7x:2x2x1
jax: 0.10.0
libtpu: 0.0.40
codegen_flags: <defaults>
</compile_context>

<pallas_src>
import functools

import jax
import jax.numpy as jnp
from jax import lax
from jax.experimental import pallas as pl
from jax.experimental.pallas import tpu as pltpu


def _round_up(a, b):
    return -(-a // b) * b


def _divmod_i32(p, d):
    """(p // d, p % d) for a non-negative int32 vector without vector int div."""
    if d & (d - 1) == 0:                       # power of two -> shift/mask
        return p >> (d.bit_length() - 1), p & (d - 1)
    q = (p.astype(jnp.float32) * (1.0 / d)).astype(jnp.int32)
    q = jnp.where(q * d > p, q - 1, q)         # float estimate is off by at most
    q = jnp.where((q + 1) * d <= p, q + 1, q)  # one; a single correction fixes it
    return q, p - q * d


def _aff_kernel(theta_ref, x_ref, o_ref, *, C, Hi, Wi, Ho, Wo, TP):
    # theta_ref: (6,) f32 in SMEM  [t00 t01 t02 t10 t11 t12]
    # x_ref    : (C*Hi, Wi) input image (channels*rows along sublanes)
    # o_ref    : (C, TP) sampled output block (TP output pixels, lane-dense)

    # ---- output pixel indices for this block, lane-dense (1, TP) ----
    p = lax.broadcasted_iota(jnp.int32, (1, TP), 1) + pl.program_id(0) * TP
    h, w = _divmod_i32(p, Wo)           # padded lanes (p >= Ho*Wo) compute
                                        # harmless garbage, sliced off outside

    # ---- affine_grid (align_corners=False), computed in-kernel ----
    bx = (2.0 * w.astype(jnp.float32) + 1.0) * (1.0 / Wo) - 1.0   # (1, TP)
    by = (2.0 * h.astype(jnp.float32) + 1.0) * (1.0 / Ho) - 1.0
    t00 = theta_ref[0]; t01 = theta_ref[1]; t02 = theta_ref[2]
    t10 = theta_ref[3]; t11 = theta_ref[4]; t12 = theta_ref[5]
    gx = t00 * bx + t01 * by + t02
    gy = t10 * bx + t11 * by + t12

    # ---- unnormalize to input pixel coords (align_corners=False) ----
    ix = ((gx + 1.0) * Wi - 1.0) * 0.5
    iy = ((gy + 1.0) * Hi - 1.0) * 0.5
    ix0 = jnp.floor(ix)
    iy0 = jnp.floor(iy)
    ix1 = ix0 + 1.0
    iy1 = iy0 + 1.0
    wx1 = ix - ix0
    wx0 = 1.0 - wx1
    wy1 = iy - iy0
    wy0 = 1.0 - wy1

    # zeros padding: fold out-of-bounds into the (1, TP) weights so an OOB
    # neighbor contributes exactly 0 even if the int cast below saturates.
    wx0 = jnp.where((ix0 >= 0.0) & (ix0 <= Wi - 1.0), wx0, 0.0)
    wx1 = jnp.where((ix1 >= 0.0) & (ix1 <= Wi - 1.0), wx1, 0.0)
    wy0 = jnp.where((iy0 >= 0.0) & (iy0 <= Hi - 1.0), wy0, 0.0)
    wy1 = jnp.where((iy1 >= 0.0) & (iy1 <= Hi - 1.0), wy1, 0.0)

    ix0i = ix0.astype(jnp.int32)
    ix1i = ix1.astype(jnp.int32)
    iy0i = iy0.astype(jnp.int32)
    iy1i = iy1.astype(jnp.int32)

    # ---- separable sampling matrices: sx (Wi, TP), sy (Hi, TP) ----
    col = lax.broadcasted_iota(jnp.int32, (Wi, 1), 0)
    row = lax.broadcasted_iota(jnp.int32, (Hi, 1), 0)
    sx = jnp.where(col == ix0i, wx0, 0.0) + jnp.where(col == ix1i, wx1, 0.0)
    sy = jnp.where(row == iy0i, wy0, 0.0) + jnp.where(row == iy1i, wy1, 0.0)

    # ---- contraction over input columns on the MXU: (C*Hi, Wi) @ (Wi, TP) ----
    tmp = lax.dot_general(
        x_ref[...], sx,
        dimension_numbers=(((1,), (0,)), ((), ())),
        preferred_element_type=jnp.float32,
    )                                                    # (C*Hi, TP)

    # ---- weight rows by sy, reduce over Hi with a block-diagonal matmul ----
    weighted = tmp * jnp.tile(sy, (C, 1))                # (C*Hi, TP)
    rr = lax.broadcasted_iota(jnp.int32, (C, C * Hi), 0)
    cc = lax.broadcasted_iota(jnp.int32, (C, C * Hi), 1)
    reduce_mat = ((cc >= rr * Hi) & (cc < (rr + 1) * Hi)).astype(jnp.float32)
    out = lax.dot_general(
        reduce_mat, weighted,
        dimension_numbers=(((1,), (0,)), ((), ())),
        preferred_element_type=jnp.float32,
    )                                                    # (C, TP)
    o_ref[...] = out.astype(o_ref.dtype)


def aff_forward(x, theta, img_shape=(16, 16)):
    """Equivalent of AFF(theta, img_shape).forward(x); x is NCHW with N == 1."""
    N, C, Hi, Wi = x.shape
    # grid_sample requires x's batch to match the batch-1 grid built by the module
    assert N == 1, "AFF builds a batch-1 affine grid; grid_sample requires N == 1"
    Ho, Wo = img_shape
    P = Ho * Wo

    # ---- lane-dense tiling of the output-pixel axis ----
    # live (., TP) f32 set per output lane: sx + sy + tmp + tiled sy + weighted
    # plus the double-buffered (C, TP) output block.
    bytes_per_lane = 4 * (Wi + Hi + 3 * C * Hi + 2 * C)
    budget = 4 * 1024 * 1024        # conservative: fits v5e 16 MiB / v7x 32 MiB scoped VMEM
    n_lane_blocks = _round_up(P, 128) // 128
    max_blocks_budget = max(1, budget // (bytes_per_lane * 128))
    # keep >= 2 grid steps whenever possible so both v7x TensorCores get work
    max_blocks_split = max(1, (n_lane_blocks + 1) // 2)
    tp_blocks = max(1, min(n_lane_blocks, max_blocks_budget, max_blocks_split))
    TP = tp_blocks * 128
    P_pad = _round_up(_round_up(P, 128), TP)
    grid = (P_pad // TP,)

    theta_flat = theta.reshape(-1).astype(jnp.float32)   # (6,) -> SMEM
    x_flat = x[0].reshape(C * Hi, Wi)                    # (C*Hi, Wi), MXU LHS
    # TODO(synk): for very large inputs where the full (C*Hi, Wi) block exceeds
    # scoped VMEM, the Hi contraction would additionally need its own
    # "arbitrary" reduction grid axis with a pl.when-initialized accumulator.

    out_flat = pl.pallas_call(
        functools.partial(_aff_kernel, C=C, Hi=Hi, Wi=Wi, Ho=Ho, Wo=Wo, TP=TP),
        out_shape=jax.ShapeDtypeStruct((C, P_pad), x.dtype),
        grid_spec=pltpu.PrefetchScalarGridSpec(
            num_scalar_prefetch=0,
            grid=grid,
            in_specs=[
                pl.BlockSpec(memory_space=pltpu.MemorySpace.SMEM),   # theta (6,)
                pl.BlockSpec((C * Hi, Wi), lambda i: (0, 0)),        # full image
            ],
            out_specs=pl.BlockSpec((C, TP), lambda i: (0, i)),
        ),
        compiler_params=pltpu.CompilerParams(
            dimension_semantics=("parallel",)),
    )(theta_flat, x_flat)

    return out_flat[:, :P].reshape(1, C, Ho, Wo)


# ---------------------------- pure-JAX reference -----------------------------

def _grid_sample_ref(x, gx, gy):
    """F.grid_sample reference (bilinear, zeros padding, align_corners=False)."""
    _, C, Hi, Wi = x.shape
    ix = ((gx + 1.0) * Wi - 1.0) * 0.5
    iy = ((gy + 1.0) * Hi - 1.0) * 0.5
    ix0 = jnp.floor(ix).astype(jnp.int32)
    iy0 = jnp.floor(iy).astype(jnp.int32)
    out = jnp.zeros((C,) + gx.shape, x.dtype)
    for dx in (0, 1):
        for dy in (0, 1):
            xx = ix0 + dx
            yy = iy0 + dy
            w = (1.0 - jnp.abs(ix - xx)) * (1.0 - jnp.abs(iy - yy))
            valid = (xx >= 0) & (xx < Wi) & (yy >= 0) & (yy < Hi)
            xc = jnp.clip(xx, 0, Wi - 1)
            yc = jnp.clip(yy, 0, Hi - 1)
            v = x[0][:, yc, xc]                      # (C, Ho, Wo)
            out = out + v * (w * valid)[None]
    return out[None]


def _aff_ref(x, theta, img_shape):
    """affine_grid (align_corners=False) + grid_sample reference."""
    Ho, Wo = img_shape
    xs = (2.0 * jnp.arange(Wo, dtype=jnp.float32) + 1.0) / Wo - 1.0
    ys = (2.0 * jnp.arange(Ho, dtype=jnp.float32) + 1.0) / Ho - 1.0
    bx, by = jnp.meshgrid(xs, ys, indexing="xy")
    gx = theta[0, 0, 0] * bx + theta[0, 0, 1] * by + theta[0, 0, 2]
    gy = theta[0, 1, 0] * bx + theta[0, 1, 1] * by + theta[0, 1, 2]
    return _grid_sample_ref(x, gx, gy)


if __name__ == "__main__":
    key = jax.random.PRNGKey(0)

    # Deterministic affine theta (1, 2, 3): rotation + scale + shift.
    ang = jnp.deg2rad(30.0)
    s = 0.9
    theta = jnp.array([[[s * jnp.cos(ang), -s * jnp.sin(ang), 0.10],
                        [s * jnp.sin(ang),  s * jnp.cos(ang), -0.05]]],
                      dtype=jnp.float32)

    # Small shapes consistent with the module: N=1 (affine_grid builds a
    # batch-1 grid, and grid_sample requires matching batch).
    x = jax.random.normal(key, (1, 4, 16, 16), dtype=jnp.float32)

    # Case 1: pow2 output grid (16x16).  Case 2: non-pow2, non-128-multiple
    # output grid (12x20) — exercises the divmod fallback and the pad/slice path.
    for img_shape in [(16, 16), (12, 20)]:
        out = aff_forward(x, theta, img_shape=img_shape)
        out = jax.block_until_ready(out)
        ref = _aff_ref(x, theta, img_shape)
        assert out.shape == (1, 4) + img_shape
        err = jnp.max(jnp.abs(out - ref))
        assert jnp.allclose(out, ref, atol=1e-5, rtol=1e-5), \
            f"img_shape={img_shape}: max err {err}"

    print("KERNEL_OK")
</pallas_src>

<mosaic_0001>
module attributes {stable_mosaic.version = 11 : i64} {
  func.func @_aff_kernel(%arg0: i32, %arg1: memref<6xf32, #tpu.memory_space<smem>>, %arg2: memref<64x16xf32, #tpu.memory_space<vmem>>, %arg3: memref<4x128xf32, #tpu.memory_space<vmem>>) attributes {dimension_semantics = [#tpu.dimension_semantics<parallel>], iteration_bounds = array<i64: 2>, scalar_prefetch = 0 : i64, scratch_operands = 0 : i64, tpu.core_type = #tpu.core_type<tc>, window_params = [{transform_indices = @transform_0, window_bounds = array<i64: 6>}, {pipeline_mode = #tpu.pipeline_mode<synchronous>, transform_indices = @transform_1, window_bounds = array<i64: 64, 16>}, {transform_indices = @transform_2, window_bounds = array<i64: 4, 128>}]} {
    %0 = tpu.iota {dimensions = array<i32: 1>} : vector<1x128xi32>
    %c128_i32 = arith.constant 128 : i32
    %1 = arith.muli %arg0, %c128_i32 : i32
    %2 = vector.broadcast %1 : i32 to vector<1x128xi32>
    %3 = arith.addi %0, %2 : vector<1x128xi32>
    %c4_i32 = arith.constant 4 : i32
    %4 = vector.broadcast %c4_i32 : i32 to vector<1x128xi32>
    %5 = arith.shrsi %3, %4 : vector<1x128xi32>
    %c15_i32 = arith.constant 15 : i32
    %6 = vector.broadcast %c15_i32 : i32 to vector<1x128xi32>
    %7 = arith.andi %3, %6 : vector<1x128xi32>
    %8 = arith.sitofp %7 : vector<1x128xi32> to vector<1x128xf32>
    %cst = arith.constant 2.000000e+00 : f32
    %9 = vector.broadcast %cst : f32 to vector<1x128xf32>
    %10 = arith.mulf %9, %8 : vector<1x128xf32>
    %cst_0 = arith.constant 1.000000e+00 : f32
    %11 = vector.broadcast %cst_0 : f32 to vector<1x128xf32>
    %12 = arith.addf %10, %11 : vector<1x128xf32>
    %cst_1 = arith.constant 6.250000e-02 : f32
    %13 = vector.broadcast %cst_1 : f32 to vector<1x128xf32>
    %14 = arith.mulf %12, %13 : vector<1x128xf32>
    %cst_2 = arith.constant 1.000000e+00 : f32
    %15 = vector.broadcast %cst_2 : f32 to vector<1x128xf32>
    %16 = arith.subf %14, %15 : vector<1x128xf32>
    %17 = arith.sitofp %5 : vector<1x128xi32> to vector<1x128xf32>
    %cst_3 = arith.constant 2.000000e+00 : f32
    %18 = vector.broadcast %cst_3 : f32 to vector<1x128xf32>
    %19 = arith.mulf %18, %17 : vector<1x128xf32>
    %cst_4 = arith.constant 1.000000e+00 : f32
    %20 = vector.broadcast %cst_4 : f32 to vector<1x128xf32>
    %21 = arith.addf %19, %20 : vector<1x128xf32>
    %cst_5 = arith.constant 6.250000e-02 : f32
    %22 = vector.broadcast %cst_5 : f32 to vector<1x128xf32>
    %23 = arith.mulf %21, %22 : vector<1x128xf32>
    %cst_6 = arith.constant 1.000000e+00 : f32
    %24 = vector.broadcast %cst_6 : f32 to vector<1x128xf32>
    %25 = arith.subf %23, %24 : vector<1x128xf32>
    %c0 = arith.constant 0 : index
    %26 = memref.load %arg1[%c0] : memref<6xf32, #tpu.memory_space<smem>>
    %c1 = arith.constant 1 : index
    %27 = memref.load %arg1[%c1] : memref<6xf32, #tpu.memory_space<smem>>
    %c2 = arith.constant 2 : index
    %28 = memref.load %arg1[%c2] : memref<6xf32, #tpu.memory_space<smem>>
    %c3 = arith.constant 3 : index
    %29 = memref.load %arg1[%c3] : memref<6xf32, #tpu.memory_space<smem>>
    %c4 = arith.constant 4 : index
    %30 = memref.load %arg1[%c4] : memref<6xf32, #tpu.memory_space<smem>>
    %c5 = arith.constant 5 : index
    %31 = memref.load %arg1[%c5] : memref<6xf32, #tpu.memory_space<smem>>
    %32 = vector.broadcast %26 : f32 to vector<1x128xf32>
    %33 = arith.mulf %32, %16 : vector<1x128xf32>
    %34 = vector.broadcast %27 : f32 to vector<1x128xf32>
    %35 = arith.mulf %34, %25 : vector<1x128xf32>
    %36 = arith.addf %33, %35 : vector<1x128xf32>
    %37 = vector.broadcast %28 : f32 to vector<1x128xf32>
    %38 = arith.addf %36, %37 : vector<1x128xf32>
    %39 = vector.broadcast %29 : f32 to vector<1x128xf32>
    %40 = arith.mulf %39, %16 : vector<1x128xf32>
    %41 = vector.broadcast %30 : f32 to vector<1x128xf32>
    %42 = arith.mulf %41, %25 : vector<1x128xf32>
    %43 = arith.addf %40, %42 : vector<1x128xf32>
    %44 = vector.broadcast %31 : f32 to vector<1x128xf32>
    %45 = arith.addf %43, %44 : vector<1x128xf32>
    %cst_7 = arith.constant 1.000000e+00 : f32
    %46 = vector.broadcast %cst_7 : f32 to vector<1x128xf32>
    %47 = arith.addf %38, %46 : vector<1x128xf32>
    %cst_8 = arith.constant 1.600000e+01 : f32
    %48 = vector.broadcast %cst_8 : f32 to vector<1x128xf32>
    %49 = arith.mulf %47, %48 : vector<1x128xf32>
    %cst_9 = arith.constant 1.000000e+00 : f32
    %50 = vector.broadcast %cst_9 : f32 to vector<1x128xf32>
    %51 = arith.subf %49, %50 : vector<1x128xf32>
    %cst_10 = arith.constant 5.000000e-01 : f32
    %52 = vector.broadcast %cst_10 : f32 to vector<1x128xf32>
    %53 = arith.mulf %51, %52 : vector<1x128xf32>
    %cst_11 = arith.constant 1.000000e+00 : f32
    %54 = vector.broadcast %cst_11 : f32 to vector<1x128xf32>
    %55 = arith.addf %45, %54 : vector<1x128xf32>
    %cst_12 = arith.constant 1.600000e+01 : f32
    %56 = vector.broadcast %cst_12 : f32 to vector<1x128xf32>
    %57 = arith.mulf %55, %56 : vector<1x128xf32>
    %cst_13 = arith.constant 1.000000e+00 : f32
    %58 = vector.broadcast %cst_13 : f32 to vector<1x128xf32>
    %59 = arith.subf %57, %58 : vector<1x128xf32>
    %cst_14 = arith.constant 5.000000e-01 : f32
    %60 = vector.broadcast %cst_14 : f32 to vector<1x128xf32>
    %61 = arith.mulf %59, %60 : vector<1x128xf32>
    %62 = math.floor %53 : vector<1x128xf32>
    %63 = math.floor %61 : vector<1x128xf32>
    %cst_15 = arith.constant 1.000000e+00 : f32
    %64 = vector.broadcast %cst_15 : f32 to vector<1x128xf32>
    %65 = arith.addf %62, %64 : vector<1x128xf32>
    %cst_16 = arith.constant 1.000000e+00 : f32
    %66 = vector.broadcast %cst_16 : f32 to vector<1x128xf32>
    %67 = arith.addf %63, %66 : vector<1x128xf32>
    %68 = arith.subf %53, %62 : vector<1x128xf32>
    %cst_17 = arith.constant 1.000000e+00 : f32
    %69 = vector.broadcast %cst_17 : f32 to vector<1x128xf32>
    %70 = arith.subf %69, %68 : vector<1x128xf32>
    %71 = arith.subf %61, %63 : vector<1x128xf32>
    %cst_18 = arith.constant 1.000000e+00 : f32
    %72 = vector.broadcast %cst_18 : f32 to vector<1x128xf32>
    %73 = arith.subf %72, %71 : vector<1x128xf32>
    %cst_19 = arith.constant 0.000000e+00 : f32
    %74 = vector.broadcast %cst_19 : f32 to vector<1x128xf32>
    %75 = arith.cmpf oge, %62, %74 : vector<1x128xf32>
    %cst_20 = arith.constant 1.500000e+01 : f32
    %76 = vector.broadcast %cst_20 : f32 to vector<1x128xf32>
    %77 = arith.cmpf ole, %62, %76 : vector<1x128xf32>
    %78 = arith.andi %75, %77 : vector<1x128xi1>
    %cst_21 = arith.constant 0.000000e+00 : f32
    %79 = vector.broadcast %cst_21 : f32 to vector<1x128xf32>
    %80 = arith.select %78, %70, %79 : vector<1x128xi1>, vector<1x128xf32>
    %cst_22 = arith.constant 0.000000e+00 : f32
    %81 = vector.broadcast %cst_22 : f32 to vector<1x128xf32>
    %82 = arith.cmpf oge, %65, %81 : vector<1x128xf32>
    %cst_23 = arith.constant 1.500000e+01 : f32
    %83 = vector.broadcast %cst_23 : f32 to vector<1x128xf32>
    %84 = arith.cmpf ole, %65, %83 : vector<1x128xf32>
    %85 = arith.andi %82, %84 : vector<1x128xi1>
    %cst_24 = arith.constant 0.000000e+00 : f32
    %86 = vector.broadcast %cst_24 : f32 to vector<1x128xf32>
    %87 = arith.select %85, %68, %86 : vector<1x128xi1>, vector<1x128xf32>
    %cst_25 = arith.constant 0.000000e+00 : f32
    %88 = vector.broadcast %cst_25 : f32 to vector<1x128xf32>
    %89 = arith.cmpf oge, %63, %88 : vector<1x128xf32>
    %cst_26 = arith.constant 1.500000e+01 : f32
    %90 = vector.broadcast %cst_26 : f32 to vector<1x128xf32>
    %91 = arith.cmpf ole, %63, %90 : vector<1x128xf32>
    %92 = arith.andi %89, %91 : vector<1x128xi1>
    %cst_27 = arith.constant 0.000000e+00 : f32
    %93 = vector.broadcast %cst_27 : f32 to vector<1x128xf32>
    %94 = arith.select %92, %73, %93 : vector<1x128xi1>, vector<1x128xf32>
    %cst_28 = arith.constant 0.000000e+00 : f32
    %95 = vector.broadcast %cst_28 : f32 to vector<1x128xf32>
    %96 = arith.cmpf oge, %67, %95 : vector<1x128xf32>
    %cst_29 = arith.constant 1.500000e+01 : f32
    %97 = vector.broadcast %cst_29 : f32 to vector<1x128xf32>
    %98 = arith.cmpf ole, %67, %97 : vector<1x128xf32>
    %99 = arith.andi %96, %98 : vector<1x128xi1>
    %cst_30 = arith.constant 0.000000e+00 : f32
    %100 = vector.broadcast %cst_30 : f32 to vector<1x128xf32>
    %101 = arith.select %99, %71, %100 : vector<1x128xi1>, vector<1x128xf32>
    %102 = arith.fptosi %62 : vector<1x128xf32> to vector<1x128xi32>
    %103 = arith.fptosi %65 : vector<1x128xf32> to vector<1x128xi32>
    %104 = arith.fptosi %63 : vector<1x128xf32> to vector<1x128xi32>
    %105 = arith.fptosi %67 : vector<1x128xf32> to vector<1x128xi32>
    %106 = tpu.iota {dimensions = array<i32: 0>} : vector<16x1xi32>
    %107 = tpu.iota {dimensions = array<i32: 0>} : vector<16x1xi32>
    %108 = vector.broadcast %106 : vector<16x1xi32> to vector<16x128xi32>
    %109 = vector.broadcast %102 : vector<1x128xi32> to vector<16x128xi32>
    %110 = arith.cmpi eq, %108, %109 : vector<16x128xi32>
    %cst_31 = arith.constant 0.000000e+00 : f32
    %111 = vector.shape_cast %80 : vector<1x128xf32> to vector<1x128xf32>
    %112 = vector.broadcast %111 : vector<1x128xf32> to vector<16x128xf32>
    %113 = vector.broadcast %cst_31 : f32 to vector<16x128xf32>
    %114 = arith.select %110, %112, %113 : vector<16x128xi1>, vector<16x128xf32>
    %115 = vector.broadcast %106 : vector<16x1xi32> to vector<16x128xi32>
    %116 = vector.broadcast %103 : vector<1x128xi32> to vector<16x128xi32>
    %117 = arith.cmpi eq, %115, %116 : vector<16x128xi32>
    %cst_32 = arith.constant 0.000000e+00 : f32
    %118 = vector.shape_cast %87 : vector<1x128xf32> to vector<1x128xf32>
    %119 = vector.broadcast %118 : vector<1x128xf32> to vector<16x128xf32>
    %120 = vector.broadcast %cst_32 : f32 to vector<16x128xf32>
    %121 = arith.select %117, %119, %120 : vector<16x128xi1>, vector<16x128xf32>
    %122 = arith.addf %114, %121 : vector<16x128xf32>
    %123 = vector.broadcast %107 : vector<16x1xi32> to vector<16x128xi32>
    %124 = vector.broadcast %104 : vector<1x128xi32> to vector<16x128xi32>
    %125 = arith.cmpi eq, %123, %124 : vector<16x128xi32>
    %cst_33 = arith.constant 0.000000e+00 : f32
    %126 = vector.shape_cast %94 : vector<1x128xf32> to vector<1x128xf32>
    %127 = vector.broadcast %126 : vector<1x128xf32> to vector<16x128xf32>
    %128 = vector.broadcast %cst_33 : f32 to vector<16x128xf32>
    %129 = arith.select %125, %127, %128 : vector<16x128xi1>, vector<16x128xf32>
    %130 = vector.broadcast %107 : vector<16x1xi32> to vector<16x128xi32>
    %131 = vector.broadcast %105 : vector<1x128xi32> to vector<16x128xi32>
    %132 = arith.cmpi eq, %130, %131 : vector<16x128xi32>
    %cst_34 = arith.constant 0.000000e+00 : f32
    %133 = vector.shape_cast %101 : vector<1x128xf32> to vector<1x128xf32>
    %134 = vector.broadcast %133 : vector<1x128xf32> to vector<16x128xf32>
    %135 = vector.broadcast %cst_34 : f32 to vector<16x128xf32>
    %136 = arith.select %132, %134, %135 : vector<16x128xi1>, vector<16x128xf32>
    %137 = arith.addf %129, %136 : vector<16x128xf32>
    %c0_35 = arith.constant 0 : index
    %c0_36 = arith.constant 0 : index
    %138 = vector.load %arg2[%c0_35, %c0_36] : memref<64x16xf32, #tpu.memory_space<vmem>>, vector<64x16xf32>
    %cst_37 = arith.constant dense<0.000000e+00> : vector<64x128xf32>
    %139 = tpu.matmul %138, %122, %cst_37 {dimension_numbers = #tpu.dot_dimension_numbers<[1], [0], [0], [1], [0, 0, 1, 1], [], []>} : vector<64x16xf32>, vector<16x128xf32>, vector<64x128xf32> -> vector<64x128xf32>
    %140 = tpu.concatenate %137, %137, %137, %137 in 0 : vector<16x128xf32>, vector<16x128xf32>, vector<16x128xf32>, vector<16x128xf32> -> vector<64x128xf32>
    %141 = arith.mulf %139, %140 : vector<64x128xf32>
    %142 = tpu.iota {dimensions = array<i32: 0>} : vector<4x64xi32>
    %143 = tpu.iota {dimensions = array<i32: 1>} : vector<4x64xi32>
    %c16_i32 = arith.constant 16 : i32
    %144 = vector.broadcast %c16_i32 : i32 to vector<4x64xi32>
    %145 = arith.muli %142, %144 : vector<4x64xi32>
    %146 = arith.cmpi sge, %143, %145 : vector<4x64xi32>
    %c1_i32 = arith.constant 1 : i32
    %147 = vector.broadcast %c1_i32 : i32 to vector<4x64xi32>
    %148 = arith.addi %142, %147 : vector<4x64xi32>
    %c16_i32_38 = arith.constant 16 : i32
    %149 = vector.broadcast %c16_i32_38 : i32 to vector<4x64xi32>
    %150 = arith.muli %148, %149 : vector<4x64xi32>
    %151 = arith.cmpi slt, %143, %150 : vector<4x64xi32>
    %152 = arith.andi %146, %151 : vector<4x64xi1>
    %153 = arith.extui %152 : vector<4x64xi1> to vector<4x64xi32>
    %154 = arith.sitofp %153 : vector<4x64xi32> to vector<4x64xf32>
    %cst_39 = arith.constant dense<0.000000e+00> : vector<4x128xf32>
    %155 = tpu.matmul %154, %141, %cst_39 {dimension_numbers = #tpu.dot_dimension_numbers<[1], [0], [0], [1], [0, 0, 1, 1], [], []>} : vector<4x64xf32>, vector<64x128xf32>, vector<4x128xf32> -> vector<4x128xf32>
    %c0_40 = arith.constant 0 : index
    %c0_41 = arith.constant 0 : index
    %156 = vector.load %arg3[%c0_40, %c0_41] : memref<4x128xf32, #tpu.memory_space<vmem>>, vector<4x128xf32>
    tpu.vector_store %arg3[%c0_40, %c0_41], %155 {strides = array<i32>} : memref<4x128xf32, #tpu.memory_space<vmem>>, vector<4x128xf32>,
    return
  }
  func.func @transform_0(%arg0: i32) -> i32 {
    %c0_i32 = arith.constant 0 : i32
    %c0_i32_0 = arith.constant 0 : i32
    return %c0_i32 : i32
  }
  func.func @transform_1(%arg0: i32) -> (i32, i32) {
    %c0_i32 = arith.constant 0 : i32
    %c0_i32_0 = arith.constant 0 : i32
    %c0_i32_1 = arith.constant 0 : i32
    return %c0_i32, %c0_i32_0 : i32, i32
  }
  func.func @transform_2(%arg0: i32) -> (i32, i32) {
    %c0_i32 = arith.constant 0 : i32
    %c0_i32_0 = arith.constant 0 : i32
    return %c0_i32, %arg0 : i32, i32
  }
}

</mosaic_0001>

<llo_original>
// kernel: tpu_custom_call.1
$region0: #{tpu_custom_call.1}
  #allocation0 [shape = 'u32[]', space=smem, size = 0x4, offset = 0x4, fixed_abs, tag = 'smem constant byte address 0x4 - core index']
  #allocation1 [shape = 'u32[144,128]{1,0:T(1,128)}', space=vmem, size = 0x12000, scoped, tag = 'internal scratch']
  %s0 = inlined_call_operand.vmem [shape: f32[6], index: 0, kind: input, shape index: {}]
  %s1 = inlined_call_operand.vmem [shape: f32[64,16], index: 1, kind: input, shape index: {}]
  %s2 = inlined_call_operand.hbm [shape: f32[4,256], index: 2, kind: output, shape index: {}]
  %s3 = sld [smem:[#allocation0]]
  $region45: #{tpu_custom_call.1} parent=0
    _
  %s5 = ssub.s32 1, %s3
  %s6 = scalar_select 0, %s5, %s3
  $region1: #{tpu_custom_call.1} parent=0
    #allocation2 [shape = 'u8[512]{0}', space=smem, size = 0x200, scoped, tag = 'input window, operand 0, single buffered']
    #allocation3 [shape = 's32[2]{0}', space=sflag, size = 0x8, scoped, tag = 'scoped memory for tpu_custom_call.1']
    #allocation4 [shape = 's32[2]{0}', space=sflag, size = 0x8, scoped, tag = 'scoped memory for tpu_custom_call.1']
    #allocation5 [shape = 'u8[4096]{0}', space=vmem, size = 0x1000, scoped, tag = 'output window, operand 0']
    %7 = vsyncpa [#allocation4], 0
    %8 = vsyncpa [#allocation3], 0
    %s9 = scalar_lea.sflag [#allocation3], 1
    %10 = vsyncpa %s9, 0
    loop: start=0, step=1, limit=4
    $region2: #{tpu_custom_call.1} parent=1 // loop_pre_header
      _
    $region3: #{tpu_custom_call.1} parent=1 // loop_header
      %s12 = sphi 0, %s16
      %p13 = scmp.ge.s32.totalorder %s12, 4
      %s20 = sphi 0, %s20
      %s22 = sphi 0, %s20
      %s23 = sphi 0, %s22
      %s37 = sphi 0, %s23
      %s41 = sphi 0, %s41
      %s43 = sphi 0, %s41
      %s44 = sphi 0, %s43
      %s58 = sphi 0, %s44
      %s64 = sphi 0, %s66
      %s67 = sphi 0, %s64
      %s68 = sphi 0, %s67
      %s84 = sphi 0, %s68
    $region4: #{tpu_custom_call.1} parent=1 // loop_header_branch
      %15 = sbr.rel (%p13) target = $region8
    $region5: #{tpu_custom_call.1} parent=1 // loop_body
      %s17 = ssub.s32 %s12, 1
      %s18 = ssub.s32 %s12, 2
      %s19 = sadd.s32 %s12, 1
      %s21 = sadd.s32 %s20, 1
      %p24 = scmp.eq.s32.totalorder %s12, 1
      %p25 = scmp.ne.s32.totalorder %s20, %s22
      %p26 = scmp.eq.s32.totalorder %s12, 0
      %p27 = por %p25, %p26
      %p28 = scmp.ne.s32.totalorder %s20, %s22
      %p29 = scmp.eq.s32.totalorder %s17, 1
      %p30 = por %p28, %p29
      %p31 = scmp.ne.s32.totalorder %s22, %s23
      %p32 = scmp.eq.s32.totalorder %s17, 0
      %p33 = por %p31, %p32
      %p34 = scmp.ne.s32.totalorder %s22, %s23
      %p35 = scmp.eq.s32.totalorder %s18, 1
      %p36 = por %p34, %p35
      %p38 = scmp.ne.s32.totalorder %s23, %s37
      %p39 = scmp.eq.s32.totalorder %s18, 0
      %p40 = por %p38, %p39
      %s42 = sadd.s32 %s41, 1
      %p45 = scmp.eq.s32.totalorder %s12, 1
      %p46 = scmp.ne.s32.totalorder %s41, %s43
      %p47 = scmp.eq.s32.totalorder %s12, 0
      %p48 = por %p46, %p47
      %p49 = scmp.ne.s32.totalorder %s41, %s43
      %p50 = scmp.eq.s32.totalorder %s17, 1
      %p51 = por %p49, %p50
      %p52 = scmp.ne.s32.totalorder %s43, %s44
      %p53 = scmp.eq.s32.totalorder %s17, 0
      %p54 = por %p52, %p53
      %p55 = scmp.ne.s32.totalorder %s43, %s44
      %p56 = scmp.eq.s32.totalorder %s18, 1
      %p57 = por %p55, %p56
      %p59 = scmp.ne.s32.totalorder %s44, %s58
      %p60 = scmp.eq.s32.totalorder %s18, 0
      %p61 = por %p59, %p60
      %s62 = ssub.s32 %s12, %s19
      %p63 = scmp.eq.s32.totalorder %s62, 0
      %s65 = sadd.s32 %s64, 1
      %s66 = scalar_select %p63, %s64, %s65
      %p69 = pneg %p63
      %p70 = scmp.eq.s32.totalorder %s12, 1
      %p71 = por %p69, %p70
      %p72 = scmp.ne.s32.totalorder %s64, %s67
      %p73 = scmp.eq.s32.totalorder %s12, 0
      %p74 = por %p72, %p73
      %p75 = scmp.ne.s32.totalorder %s64, %s67
      %p76 = scmp.eq.s32.totalorder %s17, 1
      %p77 = por %p75, %p76
      %p78 = scmp.ne.s32.totalorder %s67, %s68
      %p79 = scmp.eq.s32.totalorder %s17, 0
      %p80 = por %p78, %p79
      %p81 = scmp.ne.s32.totalorder %s67, %s68
      %p82 = scmp.eq.s32.totalorder %s18, 1
      %p83 = por %p81, %p82
      %p85 = scmp.ne.s32.totalorder %s68, %s84
      %p86 = scmp.eq.s32.totalorder %s18, 0
      %p87 = por %p85, %p86
      %p88 = scmp.le.s32.totalorder 1, %s12
      %p89 = scmp.lt.s32.totalorder %s12, 3
      %p90 = pnand %p88, %p89
      %p91 = pneg %p90
      // Predicated region
      $region9: #{tpu_custom_call.1} parent=5 // pred_check
        _
      $region10: #{tpu_custom_call.1} parent=5 // pred_check_branch
        %93 = sbr.rel (%p90) target = $region12
      $region11: #{tpu_custom_call.1} parent=5 // pred_region
        %s94 = ssub.s32 %s12, 1
        // Predicated region
        $region13: #{tpu_custom_call.1} parent=11 // pred_check
          %p95 = pneg %p33
        $region14: #{tpu_custom_call.1} parent=11 // pred_check_branch
          %97 = sbr.rel (%p95) target = $region16
        $region15: #{tpu_custom_call.1} parent=11 // pred_region
          %s99 = ssub.s32 16, 16
          %100 = vsyncadd [#allocation4], %s99
          %s102 = sshll.u32 %s0, 4
          %s103 = int_to_ptr.vmem [resolvable:$true] %s102
          %105 = dma.vmem_to_smem %s103, 16, [#allocation2], [#allocation4]
        $region16: #{tpu_custom_call.1} parent=11 // pred_fallthru
          _
        // Predicated region
        $region17: #{tpu_custom_call.1} parent=11 // pred_check
          %p106 = pneg %p54
        $region18: #{tpu_custom_call.1} parent=11 // pred_check_branch
          %108 = sbr.rel (%p106) target = $region20
        $region19: #{tpu_custom_call.1} parent=11 // pred_region
          _
        $region20: #{tpu_custom_call.1} parent=11 // pred_fallthru
          _
      $region12: #{tpu_custom_call.1} parent=5 // pred_fallthru
        _
      %p109 = scmp.lt.s32.totalorder %s12, 2
      // Predicated region
      $region21: #{tpu_custom_call.1} parent=5 // pred_check
        %p110 = pneg %p109
      $region22: #{tpu_custom_call.1} parent=5 // pred_check_branch
        %112 = sbr.rel (%p110) target = $region24
      $region23: #{tpu_custom_call.1} parent=5 // pred_region
        _
      $region24: #{tpu_custom_call.1} parent=5 // pred_fallthru
        _
      %p113 = scmp.le.s32.totalorder 1, %s12
      %p114 = scmp.lt.s32.totalorder %s12, 3
      %p115 = pnand %p113, %p114
      %p116 = pneg %p115
      // Predicated region
      $region25: #{tpu_custom_call.1} parent=5 // pred_check
        _
      $region26: #{tpu_custom_call.1} parent=5 // pred_check_branch
        %118 = sbr.rel (%p115) target = $region28
      $region27: #{tpu_custom_call.1} parent=5 // pred_region
        %s119 = ssub.s32 %s12, 1
        // Predicated region
        $region29: #{tpu_custom_call.1} parent=27 // pred_check
          %p120 = pneg %p33
        $region30: #{tpu_custom_call.1} parent=27 // pred_check_branch
          %122 = sbr.rel (%p120) target = $region32
        $region31: #{tpu_custom_call.1} parent=27 // pred_region
          %123 = dma.done [#allocation4], 16
        $region32: #{tpu_custom_call.1} parent=27 // pred_fallthru
          _
        %124 = sfence
        %p125 = pneg %p33
        %p126 = pneg %p30
        %p127 = pneg %p54
        %p128 = pneg %p51
        %p129 = pneg %p80
        %p130 = pneg %p77
        %s131 = sand.u32 %s67, 1
        %s132 = scalar_lea.sflag [#allocation3], %s131
        %s133 = sand.u32 %s67, 1
        %s134 = smul.addr %s133, 4
        %s135 = scalar_lea.vmem [#allocation5], %s134
        %v136 = vlaneseq
        %v137 = vand.u32 %v136, 127
        %s138 = smul.u32 %s17, 128
        %v139 = vstv %s138
        %v140 = vadd.s32 %v137, %v139
        %v141 = vshra.s32 %v140, 4
        %v142 = vand.u32 %v140, 15
        %v143 = vcvt.s32.f32 %v142
        %v144 = vmul.f32 %v143, 2.0
        %v145 = vadd.f32 %v144, 1.0
        %v146 = vmul.f32 %v145, 0.0625
        %v147 = vsub.f32 %v146, 1.0
        %v148 = vcvt.s32.f32 %v141
        %v149 = vmul.f32 %v148, 2.0
        %v150 = vadd.f32 %v149, 1.0
        %v151 = vmul.f32 %v150, 0.0625
        %v152 = vsub.f32 %v151, 1.0
        %s153 = sld [smem:[#allocation2]]
        %s154 = sld [smem:[#allocation2 + $0x1]]
        %s155 = sld [smem:[#allocation2 + $0x2]]
        %s156 = sld [smem:[#allocation2 + $0x3]]
        %s157 = sld [smem:[#allocation2 + $0x4]]
        %s158 = sld [smem:[#allocation2 + $0x5]]
        %v159 = vstv %s153
        %v160 = vmul.f32 %v159, %v147
        %v161 = vstv %s154
        %v162 = vmul.f32 %v161, %v152
        %v163 = vadd.f32 %v160, %v162
        %v164 = vstv %s155
        %v165 = vadd.f32 %v163, %v164
        %v166 = vstv %s156
        %v167 = vmul.f32 %v166, %v147
        %v168 = vstv %s157
        %v169 = vmul.f32 %v168, %v152
        %v170 = vadd.f32 %v167, %v169
        %v171 = vstv %s158
        %v172 = vadd.f32 %v170, %v171
        %v173 = vadd.f32 %v165, 1.0
        %v174 = vmul.f32 %v173, 16.0
        %v175 = vsub.f32 %v174, 1.0
        %v176 = vmul.f32 %v175, 0.5
        %v177 = vadd.f32 %v172, 1.0
        %v178 = vmul.f32 %v177, 16.0
        %v179 = vsub.f32 %v178, 1.0
        %v180 = vmul.f32 %v179, 0.5
        %v181 = vfloor.f32 %v176
        %v182 = vfloor.f32 %v180
        %v183 = vadd.f32 %v181, 1.0
        %v184 = vadd.f32 %v182, 1.0
        %v185 = vsub.f32 %v176, %v181
        %v186 = vsub.f32 1.0, %v185
        %v187 = vsub.f32 %v180, %v182
        %v188 = vsub.f32 1.0, %v187
        %vm189 = vcmp.ge.f32.partialorder %v181, 0.0
        %vm190 = vcmp.le.f32.partialorder %v181, 15.0
        %vm191 = vmand %vm189, %vm190
        %v192 = vsel %vm191, %v186, 0.0
        %vm193 = vcmp.ge.f32.partialorder %v183, 0.0
        %vm194 = vcmp.le.f32.partialorder %v183, 15.0
        %vm195 = vmand %vm193, %vm194
        %v196 = vsel %vm195, %v185, 0.0
        %vm197 = vcmp.ge.f32.partialorder %v182, 0.0
        %vm198 = vcmp.le.f32.partialorder %v182, 15.0
        %vm199 = vmand %vm197, %vm198
        %v200 = vsel %vm199, %v188, 0.0
        %vm201 = vcmp.ge.f32.partialorder %v184, 0.0
        %vm202 = vcmp.le.f32.partialorder %v184, 15.0
        %vm203 = vmand %vm201, %vm202
        %v204 = vsel %vm203, %v187, 0.0
        %v205 = vcvt.f32.s32.to.zero.pseudo %v181
        %v206 = vcvt.f32.s32.to.zero.pseudo %v183
        %v207 = vcvt.f32.s32.to.zero.pseudo %v182
        %v208 = vcvt.f32.s32.to.zero.pseudo %v184
        %v209 = vlaneseq
        %v210 = vshrl.u32 %v209, 7
        %v211 = vadd.s32 %v210, 8
        %vm212 = vcmp.eq.s32.totalorder %v210, %v205
        %vm213 = vcmp.eq.s32.totalorder %v211, %v205
        %v214 = vsel %vm212, %v192, 0.0
        %v215 = vsel %vm213, %v192, 0.0
        %vm216 = vcmp.eq.s32.totalorder %v210, %v206
        %vm217 = vcmp.eq.s32.totalorder %v211, %v206
        %v218 = vsel %vm216, %v196, 0.0
        %v219 = vsel %vm217, %v196, 0.0
        %v220 = vadd.f32 %v214, %v218
        %v221 = vadd.f32 %v215, %v219
        %vm222 = vcmp.eq.s32.totalorder %v210, %v207
        %vm223 = vcmp.eq.s32.totalorder %v211, %v207
        %v224 = vsel %vm222, %v200, 0.0
        %v225 = vsel %vm223, %v200, 0.0
        %vm226 = vcmp.eq.s32.totalorder %v210, %v208
        %vm227 = vcmp.eq.s32.totalorder %v211, %v208
        %v228 = vsel %vm226, %v204, 0.0
        %v229 = vsel %vm227, %v204, 0.0
        %v230 = vadd.f32 %v224, %v228
        %v231 = vadd.f32 %v225, %v229
        %v232 = vld [vmem:[%s1] sm:$0xff]
        %v233 = vld [vmem:[%s1 + $0x8] sm:$0xff]
        %v234 = vld [vmem:[%s1 + $0x10] sm:$0xff]
        %v235 = vld [vmem:[%s1 + $0x18] sm:$0xff]
        %v236 = vld [vmem:[%s1 + $0x20] sm:$0xff]
        %v237 = vld [vmem:[%s1 + $0x28] sm:$0xff]
        %v238 = vld [vmem:[%s1 + $0x30] sm:$0xff]
        %v239 = vld [vmem:[%s1 + $0x38] sm:$0xff]
        %vm240 = vcmask 130048
        %v242 = vsel %vm240, %v232, 0
        %v245 = vsel %vm240, %v233, 0
        %v248 = vsel %vm240, %v234, 0
        %v251 = vsel %vm240, %v235, 0
        %v254 = vsel %vm240, %v236, 0
        %v257 = vsel %vm240, %v237, 0
        %v260 = vsel %vm240, %v238, 0
        %v263 = vsel %vm240, %v239, 0
        %265 = vmatprep.subr.mxu0 0.0
        %266 = vmatpush1.msra.mxu0 %v220
        %267 = vmatprep.subr.mxu0 0.0
        %268 = vmatpush1.msra.mxu0 %v221
        %269 = vmatprep.subr.mxu0 0.0
        %270 = vmatpush1.msra.mxu0 0.0
        %271 = vmatprep.subr.mxu0 0.0
        %272 = vmatpush1.msra.mxu0 0.0
        %273 = vmatprep.subr.mxu0 0.0
        %274 = vmatpush1.msra.mxu0 0.0
        %275 = vmatprep.subr.mxu0 0.0
        %276 = vmatpush1.msra.mxu0 0.0
        %277 = vmatprep.subr.mxu0 0.0
        %278 = vmatpush1.msra.mxu0 0.0
        %279 = vmatprep.subr.mxu0 0.0
        %280 = vmatpush1.msra.mxu0 0.0
        %281 = vmatprep.subr.mxu0 0.0
        %282 = vmatpush1.msra.mxu0 0.0
        %283 = vmatprep.subr.mxu0 0.0
        %284 = vmatpush1.msra.mxu0 0.0
        %285 = vmatprep.subr.mxu0 0.0
        %286 = vmatpush1.msra.mxu0 0.0
        %287 = vmatprep.subr.mxu0 0.0
        %288 = vmatpush1.msra.mxu0 0.0
        %289 = vmatprep.subr.mxu0 0.0
        %290 = vmatpush1.msra.mxu0 0.0
        %291 = vmatprep.subr.mxu0 0.0
        %292 = vmatpush1.msra.mxu0 0.0
        %293 = vmatprep.subr.mxu0 0.0
        %294 = vmatpush1.msra.mxu0 0.0
        %295 = vmatprep.subr.mxu0 0.0
        %296 = vmatpush1.msra.mxu0 0.0
        %297 = vmatprep.subr.mxu0 0.0
        %298 = vmatpush1.msra.mxu0 0.0
        %299 = vmatprep.subr.mxu0 0.0
        %300 = vmatpush1.msra.mxu0 0.0
        %301 = vmatprep.subr.mxu0 0.0
        %302 = vmatpush1.msra.mxu0 0.0
        %303 = vmatprep.subr.mxu0 0.0
        %304 = vmatpush1.msra.mxu0 0.0
        %305 = vmatprep.subr.mxu0 0.0
        %306 = vmatpush1.msra.mxu0 0.0
        %307 = vmatprep.subr.mxu0 0.0
        %308 = vmatpush1.msra.mxu0 0.0
        %309 = vmatprep.subr.mxu0 0.0
        %310 = vmatpush1.msra.mxu0 0.0
        %311 = vmatprep.subr.mxu0 0.0
        %312 = vmatpush1.msra.mxu0 0.0
        %313 = vmatprep.subr.mxu0 0.0
        %314 = vmatpush1.msra.mxu0 0.0
        %315 = vmatprep.subr.mxu0 0.0
        %316 = vmatpush1.msra.mxu0 0.0
        %317 = vmatprep.subr.mxu0 0.0
        %318 = vmatpush1.msra.mxu0 0.0
        %319 = vmatprep.subr.mxu0 0.0
        %320 = vmatpush1.msra.mxu0 0.0
        %321 = vmatprep.subr.mxu0 0.0
        %322 = vmatpush1.msra.mxu0 0.0
        %323 = vmatprep.subr.mxu0 0.0
        %324 = vmatpush1.msra.mxu0 0.0
        %325 = vmatprep.subr.mxu0 0.0
        %326 = vmatpush1.msra.mxu0 0.0
        %327 = vmatprep.subr.mxu0 0.0
        %328 = vmatpush1.msra.mxu0 0.0
        %329 = vmatprep.mubr.f32.mxu0 0.0
        %330 = vmatmul.mubr.f32.gmra.mrb[0].mxu0 %v242
        %v331 = vpop.f32.mrb[0].mxu0
        %v332 = vadd.f32 0.0, %v331
        %v333 = vpop.f32.mrb[0].mxu0
        %334 = vmatprep.mubr.f32.mxu0 0.0
        %335 = vmatmul.mubr.f32.gmra.mrb[0].mxu0 %v245
        %v336 = vpop.f32.mrb[0].mxu0
        %v337 = vadd.f32 0.0, %v336
        %v338 = vpop.f32.mrb[0].mxu0
        %339 = vmatprep.mubr.f32.mxu0 0.0
        %340 = vmatmul.mubr.f32.gmra.mrb[0].mxu0 %v248
        %v341 = vpop.f32.mrb[0].mxu0
        %v342 = vadd.f32 0.0, %v341
        %v343 = vpop.f32.mrb[0].mxu0
        %344 = vmatprep.mubr.f32.mxu0 0.0
        %345 = vmatmul.mubr.f32.gmra.mrb[0].mxu0 %v251
        %v346 = vpop.f32.mrb[0].mxu0
        %v347 = vadd.f32 0.0, %v346
        %v348 = vpop.f32.mrb[0].mxu0
        %349 = vmatprep.mubr.f32.mxu0 0.0
        %350 = vmatmul.mubr.f32.gmra.mrb[0].mxu0 %v254
        %v351 = vpop.f32.mrb[0].mxu0
        %v352 = vadd.f32 0.0, %v351
        %v353 = vpop.f32.mrb[0].mxu0
        %354 = vmatprep.mubr.f32.mxu0 0.0
        %355 = vmatmul.mubr.f32.gmra.mrb[0].mxu0 %v257
        %v356 = vpop.f32.mrb[0].mxu0
        %v357 = vadd.f32 0.0, %v356
        %v358 = vpop.f32.mrb[0].mxu0
        %359 = vmatprep.mubr.f32.mxu0 0.0
        %360 = vmatmul.mubr.f32.gmra.mrb[0].mxu0 %v260
        %v361 = vpop.f32.mrb[0].mxu0
        %v362 = vadd.f32 0.0, %v361
        %v363 = vpop.f32.mrb[0].mxu0
        %364 = vmatprep.mubr.f32.mxu0 0.0
        %365 = vmatmul.mubr.f32.gmra.mrb[0].mxu0 %v263
        %v366 = vpop.f32.mrb[0].mxu0
        %v367 = vadd.f32 0.0, %v366
        %v368 = vpop.f32.mrb[0].mxu0
        %369 = vdwg.mxu0
        %v370 = vmul.f32 %v332, %v230
        %v371 = vmul.f32 %v337, %v231
        %v372 = vmul.f32 %v342, %v230
        %v373 = vmul.f32 %v347, %v231
        %v374 = vmul.f32 %v352, %v230
        %v375 = vmul.f32 %v357, %v231
        %v376 = vmul.f32 %v362, %v230
        %v377 = vmul.f32 %v367, %v231
        %v378 = vmul.u32 %v210, 16
        %vm379 = vcmp.ge.s32.totalorder %v137, %v378
        %v380 = vadd.s32 %v210, 1
        %v381 = vmul.u32 %v380, 16
        %vm382 = vcmp.lt.s32.totalorder %v137, %v381
        %vm383 = vmand %vm379, %vm382
        %v384 = vsel %vm383, 1, 0
        %v385 = vcvt.s32.f32 %v384
        %vm386 = vcmask 523264
        %v388 = vsel %vm386, %v385, 0
        %390 = vmatprep.subr.mxu0 0.0
        %391 = vmatpush1.msra.mxu0 %v370
        %392 = vmatprep.subr.mxu0 0.0
        %393 = vmatpush1.msra.mxu0 %v371
        %394 = vmatprep.subr.mxu0 0.0
        %395 = vmatpush1.msra.mxu0 %v372
        %396 = vmatprep.subr.mxu0 0.0
        %397 = vmatpush1.msra.mxu0 %v373
        %398 = vmatprep.subr.mxu0 0.0
        %399 = vmatpush1.msra.mxu0 %v374
        %400 = vmatprep.subr.mxu0 0.0
        %401 = vmatpush1.msra.mxu0 %v375
        %402 = vmatprep.subr.mxu0 0.0
        %403 = vmatpush1.msra.mxu0 %v376
        %404 = vmatprep.subr.mxu0 0.0
        %405 = vmatpush1.msra.mxu0 %v377
        %406 = vmatprep.subr.mxu0 0.0
        %407 = vmatpush1.msra.mxu0 0.0
        %408 = vmatprep.subr.mxu0 0.0
        %409 = vmatpush1.msra.mxu0 0.0
        %410 = vmatprep.subr.mxu0 0.0
        %411 = vmatpush1.msra.mxu0 0.0
        %412 = vmatprep.subr.mxu0 0.0
        %413 = vmatpush1.msra.mxu0 0.0
        %414 = vmatprep.subr.mxu0 0.0
        %415 = vmatpush1.msra.mxu0 0.0
        %416 = vmatprep.subr.mxu0 0.0
        %417 = vmatpush1.msra.mxu0 0.0
        %418 = vmatprep.subr.mxu0 0.0
        %419 = vmatpush1.msra.mxu0 0.0
        %420 = vmatprep.subr.mxu0 0.0
        %421 = vmatpush1.msra.mxu0 0.0
        %422 = vmatprep.subr.mxu0 0.0
        %423 = vmatpush1.msra.mxu0 0.0
        %424 = vmatprep.subr.mxu0 0.0
        %425 = vmatpush1.msra.mxu0 0.0
        %426 = vmatprep.subr.mxu0 0.0
        %427 = vmatpush1.msra.mxu0 0.0
        %428 = vmatprep.subr.mxu0 0.0
        %429 = vmatpush1.msra.mxu0 0.0
        %430 = vmatprep.subr.mxu0 0.0
        %431 = vmatpush1.msra.mxu0 0.0
        %432 = vmatprep.subr.mxu0 0.0
        %433 = vmatpush1.msra.mxu0 0.0
        %434 = vmatprep.subr.mxu0 0.0
        %435 = vmatpush1.msra.mxu0 0.0
        %436 = vmatprep.subr.mxu0 0.0
        %437 = vmatpush1.msra.mxu0 0.0
        %438 = vmatprep.subr.mxu0 0.0
        %439 = vmatpush1.msra.mxu0 0.0
        %440 = vmatprep.subr.mxu0 0.0
        %441 = vmatpush1.msra.mxu0 0.0
        %442 = vmatprep.subr.mxu0 0.0
        %443 = vmatpush1.msra.mxu0 0.0
        %444 = vmatprep.subr.mxu0 0.0
        %445 = vmatpush1.msra.mxu0 0.0
        %446 = vmatprep.subr.mxu0 0.0
        %447 = vmatpush1.msra.mxu0 0.0
        %448 = vmatprep.subr.mxu0 0.0
        %449 = vmatpush1.msra.mxu0 0.0
        %450 = vmatprep.subr.mxu0 0.0
        %451 = vmatpush1.msra.mxu0 0.0
        %452 = vmatprep.subr.mxu0 0.0
        %453 = vmatpush1.msra.mxu0 0.0
        %454 = vmatprep.mubr.f32.mxu0 0.0
        %455 = vmatmul.mubr.f32.gmra.mrb[0].mxu0 %v388
        %v456 = vpop.f32.mrb[0].mxu0
        %v457 = vadd.f32 0.0, %v456
        %v458 = vpop.f32.mrb[0].mxu0
        %459 = vdwg.mxu0
        %460 = vst [vmem:[%s135] sm:$0xf] %v457
        %s461 = sand.u32 %s67, 1
        %s462 = scalar_lea.sflag [#allocation3], %s461
        %s463 = sand.u32 %s67, 1
        %s464 = smul.addr %s463, 4
        %s465 = scalar_lea.vmem [#allocation5], %s464
        // Predicated region
        $region33: #{tpu_custom_call.1} parent=27 // pred_check
          %p466 = pneg %p77
        $region34: #{tpu_custom_call.1} parent=27 // pred_check_branch
          %468 = sbr.rel (%p466) target = $region36
        $region35: #{tpu_custom_call.1} parent=27 // pred_region
          %s470 = ssub.s32 64, 64
          %471 = vsyncadd %s462, %s470
          %s472 = smul.addr %s17, 64
          %s473 = scalar_lea.hbm %s2, %s472
          %s475 = sshll.u32 %s465, 4
          %s476 = int_to_ptr.vmem [resolvable:$true] %s475
          %478 = dma.vmem_to_hbm [thread:$0]  %s476, 64, %s473, %s462
        $region36: #{tpu_custom_call.1} parent=27 // pred_fallthru
          _
      $region28: #{tpu_custom_call.1} parent=5 // pred_fallthru
        _
      %p479 = scmp.le.s32.totalorder 2, %s12
      // Predicated region
      $region37: #{tpu_custom_call.1} parent=5 // pred_check
        %p480 = pneg %p479
      $region38: #{tpu_custom_call.1} parent=5 // pred_check_branch
        %482 = sbr.rel (%p480) target = $region40
      $region39: #{tpu_custom_call.1} parent=5 // pred_region
        %s483 = ssub.s32 %s12, 2
        // Predicated region
        $region41: #{tpu_custom_call.1} parent=39 // pred_check
          %p484 = pneg %p83
        $region42: #{tpu_custom_call.1} parent=39 // pred_check_branch
          %486 = sbr.rel (%p484) target = $region44
        $region43: #{tpu_custom_call.1} parent=39 // pred_region
          %s487 = sand.u32 %s68, 1
          %s488 = scalar_lea.sflag [#allocation3], %s487
          %s489 = sand.u32 %s68, 1
          %s490 = smul.addr %s489, 4
          %s491 = scalar_lea.vmem [#allocation5], %s490
          %492 = dma.done %s488, 64
        $region44: #{tpu_custom_call.1} parent=39 // pred_fallthru
          _
      $region40: #{tpu_custom_call.1} parent=5 // pred_fallthru
        _
    $region6: #{tpu_custom_call.1} parent=1 // loop_footer
      %s16 = sadd.s32 1, %s12
    $region7: #{tpu_custom_call.1} parent=1 // loop_footer_branch
      %11 = sbr.rel target = $region3
    $region8: #{tpu_custom_call.1} parent=1 // loop_exit
      _
    %493 = vsyncpa [#allocation3], 1
    %s494 = scalar_lea.sflag [#allocation3], 1
    %495 = vsyncpa %s494, 1
    %496 = vsyncpa [#allocation4], 1
    %s497 = scalar_lea.sflag [#allocation4], 1
    %498 = vsyncpa %s497, 1

</llo_original>
